<compile_context>
chip_gen: v5e
topology: v5e:2x2
jax: 0.10.0
libtpu: 0.0.40
codegen_flags: <defaults>
</compile_context>

<pallas_src>
import numpy as np
import jax
import jax.numpy as jnp
from jax.experimental import pallas as pl
from jax.experimental.pallas import tpu as pltpu


def _copy_kernel(x_ref, o_ref):
    # Straight identity copy of the current (tb, lane) tile.
    o_ref[...] = x_ref[...]


def _sublane_multiple(dtype):
    """Full-packed-vreg row granularity: 8 for 32-bit, 16 for 16-bit, 32 for 8-bit."""
    itemsize = np.dtype(dtype).itemsize
    if itemsize >= 4:
        return 8
    if itemsize == 2:
        return 16
    return 32


def _pick_lane_width(total, sub_mult, max_lanes=1024):
    """Largest lane width <= max_lanes that is a multiple of 128, divides
    `total`, and leaves at least `sub_mult` rows.  None if impossible."""
    best = None
    lane = 128
    while lane <= max_lanes:
        if total % lane == 0 and (total // lane) >= sub_mult:
            best = lane
        lane += 128
    return best


def _divisors(n):
    divs = []
    i = 1
    while i * i <= n:
        if n % i == 0:
            divs.append(i)
            if i != n // i:
                divs.append(n // i)
        i += 1
    return divs


def _pick_row_block(rows, lane, itemsize, budget_bytes, sub_mult):
    """Largest row-block tb that divides `rows`, is a multiple of `sub_mult`,
    and keeps tb * lane * itemsize <= budget_bytes.  None if impossible
    (caller must fall back to the metadata-only reshape -- never emit a block
    that ignores the VMEM budget)."""
    max_rows = budget_bytes // (lane * itemsize)
    for tb in sorted(_divisors(rows), reverse=True):
        if tb <= max_rows and tb % sub_mult == 0:
            return tb
    return None


def _generation_tuning():
    """(block_budget_bytes, vmem_limit_bytes or None) per TPU generation."""
    try:
        kind = jax.devices()[0].device_kind.lower()
    except Exception:
        kind = ""
    if "v7" in kind:
        # 64 MiB physical VMEM, 32 MiB scoped default; 4x 8 MiB working set
        # needs an explicit limit.  Big blocks matter most at 3.2 TB/s HBM.
        return 8 << 20, 40 << 20
    if "v6" in kind or "trillium" in kind:
        # 128 MiB physical; give headroom above the 32 MiB scoped default.
        return 8 << 20, 48 << 20
    # v5e (16 MiB scoped default) and unknown chips: 4x 2 MiB = 8 MiB fits.
    return 2 << 20, None


def view_module_forward(x, shape, *, use_pallas_copy=False, donate_input=False,
                        block_budget_bytes=None):
    """Pallas equivalent of ViewModule(shape).forward(x).

    Default: metadata-only reshape (what torch .view actually is).
    use_pallas_copy=True: route the bytes through a tiled identity-copy kernel.
    donate_input=True: additionally alias the output onto the input buffer
      (only valid when the caller donates x, e.g. jax.jit(..., donate_argnums)).
    """
    target = tuple(int(s) for s in shape)
    feat = int(np.prod(x.shape[1:]))
    assert feat == int(np.prod(target)), (
        f"prod(x.shape[1:])={feat} must equal prod(shape)={int(np.prod(target))}")
    out_shape = (-1,) + target

    if not use_pallas_copy:
        # Biggest win: a view is zero-copy in XLA too.
        return jnp.reshape(x, out_shape)

    total = int(np.prod(x.shape))
    itemsize = np.dtype(x.dtype).itemsize
    sub_mult = _sublane_multiple(x.dtype)

    budget, vmem_limit = _generation_tuning()
    if block_budget_bytes is not None:
        budget = int(block_budget_bytes)

    lane = _pick_lane_width(total, sub_mult)
    if lane is None:
        # Too small / not 128-divisible to tile usefully: a copy kernel would
        # only add HBM traffic and masked stores; use the zero-cost reshape.
        return jnp.reshape(x, out_shape)

    rows = total // lane
    tb = _pick_row_block(rows, lane, itemsize, budget, sub_mult)
    if tb is None:
        # No legal block within the VMEM budget: fall back to the safe path
        # instead of emitting a single oversized block.
        return jnp.reshape(x, out_shape)

    grid = (rows // tb,)

    # Metadata-only re-flatten to a lane-dense, sublane-full 2-D slab.
    x2d = jnp.reshape(x, (rows, lane))

    cp_kwargs = dict(dimension_semantics=("parallel",))
    if vmem_limit is not None:
        cp_kwargs["vmem_limit_bytes"] = int(vmem_limit)

    call_kwargs = {}
    if donate_input:
        # Only when the caller actually donates x; otherwise XLA would insert
        # a full defensive copy and double the HBM traffic.
        call_kwargs["input_output_aliases"] = {0: 0}

    out2d = pl.pallas_call(
        _copy_kernel,
        out_shape=jax.ShapeDtypeStruct((rows, lane), x.dtype),
        grid_spec=pltpu.PrefetchScalarGridSpec(
            num_scalar_prefetch=0,
            grid=grid,
            in_specs=[pl.BlockSpec((tb, lane), lambda i: (i, 0))],
            out_specs=pl.BlockSpec((tb, lane), lambda i: (i, 0)),
        ),
        cost_estimate=pl.CostEstimate(
            flops=0, transcendentals=0, bytes_accessed=2 * total * itemsize),
        compiler_params=pltpu.CompilerParams(**cp_kwargs),
        **call_kwargs,
    )(x2d)

    return jnp.reshape(out2d, out_shape)


if __name__ == "__main__":
    key = jax.random.PRNGKey(0)
    # Example consistent with the module: x of shape (2, 4, 16, 16) NCHW,
    # ViewModule(shape=(4, 256)) -> output (2, 4, 256).
    x = jax.random.normal(key, (2, 4, 16, 16), dtype=jnp.float32)
    target_shape = (4, 256)

    # Reference: pure-JAX reshape (identical element ordering to torch .view).
    ref = jnp.reshape(x, (-1,) + target_shape)

    # 1) Default (recommended) path: metadata-only reshape, no kernel.
    out_fast = jax.block_until_ready(view_module_forward(x, target_shape))

    # 2) Pallas identity-copy path, no donation (x has other live consumers).
    out_pallas = jax.block_until_ready(
        view_module_forward(x, target_shape, use_pallas_copy=True))

    # 3) Pallas copy path with a genuinely donated input: the only consumer of
    #    x_donate is this jit-ed call, so the {0:0} alias is actually honored.
    donated_fn = jax.jit(
        lambda a: view_module_forward(a, target_shape, use_pallas_copy=True,
                                      donate_input=True),
        donate_argnums=(0,))
    x_donate = jnp.array(np.asarray(x))  # fresh buffer, sole use is below
    out_donated = jax.block_until_ready(donated_fn(x_donate))

    for out in (out_fast, out_pallas, out_donated):
        assert out.shape == (2, 4, 256), out.shape
        assert out.dtype == x.dtype
        np.testing.assert_array_equal(np.asarray(out), np.asarray(ref))

    print("KERNEL_OK")
</pallas_src>

<mosaic_0001>
module attributes {stable_mosaic.version = 11 : i64} {
  func.func @_copy_kernel(%arg0: i32, %arg1: memref<8x256xf32, #tpu.memory_space<vmem>>, %arg2: memref<8x256xf32, #tpu.memory_space<vmem>>) attributes {dimension_semantics = [#tpu.dimension_semantics<parallel>], iteration_bounds = array<i64: 1>, scalar_prefetch = 0 : i64, scratch_operands = 0 : i64, tpu.core_type = #tpu.core_type<tc>, window_params = [{transform_indices = @transform_0, window_bounds = array<i64: 8, 256>}, {transform_indices = @transform_1, window_bounds = array<i64: 8, 256>}]} {
    %c0 = arith.constant 0 : index
    %c0_0 = arith.constant 0 : index
    %0 = vector.load %arg1[%c0, %c0_0] : memref<8x256xf32, #tpu.memory_space<vmem>>, vector<8x256xf32>
    %c0_1 = arith.constant 0 : index
    %c0_2 = arith.constant 0 : index
    %1 = vector.load %arg2[%c0_1, %c0_2] : memref<8x256xf32, #tpu.memory_space<vmem>>, vector<8x256xf32>
    tpu.vector_store %arg2[%c0_1, %c0_2], %0 {strides = array<i32>} : memref<8x256xf32, #tpu.memory_space<vmem>>, vector<8x256xf32>,
    return
  }
  func.func @transform_0(%arg0: i32) -> (i32, i32) {
    %c0_i32 = arith.constant 0 : i32
    %c0_i32_0 = arith.constant 0 : i32
    return %arg0, %c0_i32 : i32, i32
  }
  func.func @transform_1(%arg0: i32) -> (i32, i32) {
    %c0_i32 = arith.constant 0 : i32
    %c0_i32_0 = arith.constant 0 : i32
    return %arg0, %c0_i32 : i32, i32
  }
}

</mosaic_0001>

<llo_original>
// kernel: tpu_custom_call.1
$region0: #{tpu_custom_call.1}
  #allocation0 [shape = 'u32[]', space=smem, size = 0x4, offset = 0x4, fixed_abs, tag = 'smem constant byte address 0x4 - core index']
  #allocation1 [shape = 'u32[72,128]{1,0:T(1,128)}', space=vmem, size = 0x9000, scoped, tag = 'internal scratch']
  %s0 = inlined_call_operand.hbm [shape: f32[8,256], index: 0, kind: input, shape index: {}]
  %s1 = inlined_call_operand.hbm [shape: f32[8,256], index: 1, kind: output, shape index: {}]
  %s2 = sld [smem:[#allocation0]]
  $region18: #{tpu_custom_call.1} parent=0
    _
  %s4 = ssub.s32 1, %s2
  %s5 = scalar_select 0, %s4, %s2
  $region1: #{tpu_custom_call.1} parent=0
    #allocation2 [shape = 'u8[8192]{0}', space=vmem, size = 0x2000, scoped, tag = 'input window, operand 0, single buffered']
    #allocation3 [shape = 's32[1]{0}', space=sflag, size = 0x4, scoped, tag = 'scoped memory for tpu_custom_call.1']
    #allocation4 [shape = 's32[1]{0}', space=sflag, size = 0x4, scoped, tag = 'scoped memory for tpu_custom_call.1']
    #allocation5 [shape = 'u8[8192]{0}', space=vmem, size = 0x2000, scoped, tag = 'output window, operand 0, single buffered']
    %6 = vsyncpa [#allocation3], 0
    %7 = vsyncpa [#allocation4], 0
    // Predicated region
    $region2: #{tpu_custom_call.1} parent=1 // pred_check
      _
    $region3: #{tpu_custom_call.1} parent=1 // pred_check_branch
      %9 = sbr.rel (0) target = $region5
    $region4: #{tpu_custom_call.1} parent=1 // pred_region
      %11 = vsyncadd [#allocation3], 0
      %s13 = sshll.u32 %s0, 4
      %s14 = int_to_ptr.hbm [resolvable:$true] %s13
      %s15 = sshll.u32 [#allocation2], 4
      %s16 = int_to_ptr.vmem [resolvable:$true] %s15
      %18 = dma.hbm_to_vmem [thread:$0]  %s14, 256, %s16, [#allocation3]
    $region5: #{tpu_custom_call.1} parent=1 // pred_fallthru
      _
    // Predicated region
    $region6: #{tpu_custom_call.1} parent=1 // pred_check
      _
    $region7: #{tpu_custom_call.1} parent=1 // pred_check_branch
      %20 = sbr.rel (0) target = $region9
    $region8: #{tpu_custom_call.1} parent=1 // pred_region
      %22 = dma.done [#allocation3], 256
    $region9: #{tpu_custom_call.1} parent=1 // pred_fallthru
      _
    %v23 = vld [vmem:[#allocation2] sm:$0xff]
    %v24 = vld [vmem:[#allocation2 + $0x8] sm:$0xff]
    %25 = vst [vmem:[#allocation5] sm:$0xff] %v23
    %26 = vst [vmem:[#allocation5 + $0x8] sm:$0xff] %v24
    // Predicated region
    $region10: #{tpu_custom_call.1} parent=1 // pred_check
      _
    $region11: #{tpu_custom_call.1} parent=1 // pred_check_branch
      %28 = sbr.rel (0) target = $region13
    $region12: #{tpu_custom_call.1} parent=1 // pred_region
      %30 = vsyncadd [#allocation4], 0
      %s32 = sshll.u32 [#allocation5], 4
      %s33 = int_to_ptr.vmem [resolvable:$true] %s32
      %s34 = sshll.u32 %s1, 4
      %s35 = int_to_ptr.hbm [resolvable:$true] %s34
      %37 = dma.vmem_to_hbm [thread:$0]  %s33, 256, %s35, [#allocation4]
    $region13: #{tpu_custom_call.1} parent=1 // pred_fallthru
      _
    // Predicated region
    $region14: #{tpu_custom_call.1} parent=1 // pred_check
      _
    $region15: #{tpu_custom_call.1} parent=1 // pred_check_branch
      %39 = sbr.rel (0) target = $region17
    $region16: #{tpu_custom_call.1} parent=1 // pred_region
      %41 = dma.done [#allocation4], 256
    $region17: #{tpu_custom_call.1} parent=1 // pred_fallthru
      _
    %42 = vsyncpa [#allocation3], 1
    %43 = vsyncpa [#allocation4], 1

</llo_original>
